<compile_context>
chip_gen: v5e
topology: v5e:2x2
jax: 0.10.0
libtpu: 0.0.40
codegen_flags: <defaults>
</compile_context>

<pallas_src>
import functools

import jax
import jax.numpy as jnp
from jax.experimental import pallas as pl
from jax.experimental.pallas import tpu as pltpu


def rnn_logsoftmax_kernel(x_ref, wih_ref, whh_ref, b_ref, wo_ref, bo_ref,
                          out_ref, *, seq, batch):
    """Single-layer tanh RNN + Linear + log_softmax, fully VMEM/vreg resident.

    x_ref   : (S*B, Ipad)  time-major flattened inputs (row = t*B + b)
    wih_ref : (Ipad, H)    W_ih^T, zero-padded rows for the padded input lanes
    whh_ref : (H, H)       W_hh^T
    b_ref   : (1, H)       b_ih + b_hh
    wo_ref  : (H, Opad)    o2o.weight^T, zero-padded to a 128-multiple of lanes
    bo_ref  : (1, Opad)    o2o.bias, padding lanes = -1e30 (excluded by softmax)
    out_ref : (S*B, Opad)  log-probs on the lane-dense slab (row = t*B + b)
    """
    hidden = whh_ref.shape[0]

    # One batched input projection for all (t, b); bias folded in once.
    # Result stays in vregs (S*B*H*4 bytes ~= a handful of vregs).
    xw = jnp.dot(x_ref[...], wih_ref[...],
                 preferred_element_type=jnp.float32) + b_ref[...]

    # Recurrent weight held in vregs across the whole unrolled loop.
    whh = whh_ref[...]

    # Static Python unroll of the recurrence; hidden state carried in vregs,
    # per-step inputs sliced statically out of the vreg-resident xw slab, and
    # per-step outputs collected in vregs (no VMEM store/load on the serial
    # dependency chain).
    h = jnp.zeros((batch, hidden), jnp.float32)       # torch.zeros hidden init
    hs = []
    for t in range(seq):
        pre = xw[t * batch:(t + 1) * batch, :] + jnp.dot(
            h, whh, preferred_element_type=jnp.float32)
        h = jnp.tanh(pre)
        hs.append(h)
    hs_all = jnp.concatenate(hs, axis=0)               # (S*B, H), row = t*B + b

    # o2o linear over all timesteps on the lane-dense output slab, fed straight
    # from the vreg hidden slab (no intermediate VMEM writeback).
    logits = jnp.dot(hs_all, wo_ref[...],
                     preferred_element_type=jnp.float32) + bo_ref[...]

    # log_softmax over the last dim.  Padding lanes carry -1e30 logits, so
    # exp() underflows to exactly 0 in f32 and the real lanes are unaffected.
    m = jnp.max(logits, axis=1, keepdims=True)
    shifted = logits - m
    lse = jnp.log(jnp.sum(jnp.exp(shifted), axis=1, keepdims=True))
    out_ref[...] = shifted - lse


def rnn_forward(x, w_ih, w_hh, b_ih, b_hh, w_o, b_o):
    """Pallas equivalent of RNN.forward, generalized to batch.

    x     : (B, S, I)  float32, batch_first like PyTorch
    w_ih  : (H, I), w_hh : (H, H), b_ih/b_hh : (H,)   -- nn.RNN params
    w_o   : (O, H), b_o  : (O,)                        -- o2o Linear params
    Returns (S, O) log-probs for B == 1 (matching the torch module's forward,
    which asserts batch==1), otherwise (B, S, O).
    """
    B, S, I = x.shape
    H = w_hh.shape[0]
    O = w_o.shape[0]
    ipad = ((I + 127) // 128) * 128     # lane/sublane-aligned contracting dim
    opad = ((O + 127) // 128) * 128     # lane-dense output slab

    # Time-major flatten so each timestep's batch rows are contiguous sublanes.
    x_tm = jnp.transpose(x.astype(jnp.float32), (1, 0, 2)).reshape(S * B, I)
    x_p = jnp.zeros((S * B, ipad), jnp.float32).at[:, :I].set(x_tm)
    wih_t = jnp.zeros((ipad, H), jnp.float32).at[:I, :].set(
        w_ih.T.astype(jnp.float32))
    whh_t = w_hh.T.astype(jnp.float32)
    b = (b_ih + b_hh).reshape(1, H).astype(jnp.float32)

    # Pad o2o to a 128-multiple lane width: zero weight columns + very negative
    # bias in the padding lanes keep f32 log_softmax exact on the real lanes.
    wo_t = jnp.zeros((H, opad), jnp.float32).at[:, :O].set(
        w_o.T.astype(jnp.float32))
    bo = jnp.full((1, opad), -1e30, jnp.float32).at[0, :O].set(
        b_o.astype(jnp.float32))

    kernel = functools.partial(rnn_logsoftmax_kernel, seq=S, batch=B)
    out_padded = pl.pallas_call(
        kernel,
        out_shape=jax.ShapeDtypeStruct((S * B, opad), jnp.float32),
        in_specs=[pl.BlockSpec(memory_space=pltpu.MemorySpace.VMEM)] * 6,
        out_specs=pl.BlockSpec(memory_space=pltpu.MemorySpace.VMEM),
    )(x_p, wih_t, whh_t, b, wo_t, bo)

    out = out_padded[:, :O].reshape(S, B, O)
    if B == 1:
        return out[:, 0, :]                # (S, O), matching the torch module
    return jnp.transpose(out, (1, 0, 2))   # (B, S, O)


def reference_forward(x, w_ih, w_hh, b_ih, b_hh, w_o, b_o):
    """Pure-JAX reference matching torch semantics, for sanity check."""
    B, S, _ = x.shape
    h = jnp.zeros((B, w_hh.shape[0]), jnp.float32)
    hs = []
    for t in range(S):
        h = jnp.tanh(x[:, t, :] @ w_ih.T + b_ih + h @ w_hh.T + b_hh)
        hs.append(h)
    hs = jnp.stack(hs, axis=1)                       # (B, S, H)
    logits = hs @ w_o.T + b_o
    out = jax.nn.log_softmax(logits, axis=-1)
    return out[0] if B == 1 else out


if __name__ == "__main__":
    # Shapes consistent with the module: hidden_size=128,
    # output_size = len(ALL_CHARS) = 60,
    # input_size = len(ALL_CHARS) + num_categories = 60 + 18 = 78, seq=8.
    SEQ, INPUT, HIDDEN, OUTPUT = 8, 78, 128, 60

    key = jax.random.PRNGKey(0)
    k = jax.random.split(key, 8)
    bound = 1.0 / jnp.sqrt(HIDDEN)

    w_ih = jax.random.uniform(k[1], (HIDDEN, INPUT), jnp.float32, -bound, bound)
    w_hh = jax.random.uniform(k[2], (HIDDEN, HIDDEN), jnp.float32, -bound, bound)
    b_ih = jax.random.uniform(k[3], (HIDDEN,), jnp.float32, -bound, bound)
    b_hh = jax.random.uniform(k[4], (HIDDEN,), jnp.float32, -bound, bound)
    w_o = jax.random.uniform(k[5], (OUTPUT, HIDDEN), jnp.float32, -bound, bound)
    b_o = jax.random.uniform(k[6], (OUTPUT,), jnp.float32, -bound, bound)

    # 1) batch == 1: exact module semantics (forward asserts batch 1 in torch).
    x1 = jax.random.normal(k[0], (1, SEQ, INPUT), jnp.float32)
    out1 = jax.block_until_ready(rnn_forward(x1, w_ih, w_hh, b_ih, b_hh, w_o, b_o))
    ref1 = reference_forward(x1, w_ih, w_hh, b_ih, b_hh, w_o, b_o)
    assert out1.shape == (SEQ, OUTPUT)
    assert jnp.allclose(out1, ref1, atol=1e-4, rtol=1e-4)

    # 2) batched call (perf lever: fills the MXU M dim, amortizes launch cost).
    BATCH = 4
    xb = jax.random.normal(k[7], (BATCH, SEQ, INPUT), jnp.float32)
    outb = jax.block_until_ready(rnn_forward(xb, w_ih, w_hh, b_ih, b_hh, w_o, b_o))
    refb = reference_forward(xb, w_ih, w_hh, b_ih, b_hh, w_o, b_o)
    assert outb.shape == (BATCH, SEQ, OUTPUT)
    assert jnp.allclose(outb, refb, atol=1e-4, rtol=1e-4)

    print("KERNEL_OK")
</pallas_src>

<mosaic_0001>
module attributes {stable_mosaic.version = 11 : i64} {
  func.func @rnn_logsoftmax_kernel(%arg0: memref<8x128xf32, #tpu.memory_space<vmem>>, %arg1: memref<128x128xf32, #tpu.memory_space<vmem>>, %arg2: memref<128x128xf32, #tpu.memory_space<vmem>>, %arg3: memref<1x128xf32, #tpu.memory_space<vmem>>, %arg4: memref<128x128xf32, #tpu.memory_space<vmem>>, %arg5: memref<1x128xf32, #tpu.memory_space<vmem>>, %arg6: memref<8x128xf32, #tpu.memory_space<vmem>>) attributes {dimension_semantics = [], scalar_prefetch = 0 : i64, scratch_operands = 0 : i64, tpu.core_type = #tpu.core_type<tc>} {
    %c0 = arith.constant 0 : index
    %c0_0 = arith.constant 0 : index
    %0 = vector.load %arg0[%c0, %c0_0] : memref<8x128xf32, #tpu.memory_space<vmem>>, vector<8x128xf32>
    %c0_1 = arith.constant 0 : index
    %c0_2 = arith.constant 0 : index
    %1 = vector.load %arg1[%c0_1, %c0_2] : memref<128x128xf32, #tpu.memory_space<vmem>>, vector<128x128xf32>
    %cst = arith.constant dense<0.000000e+00> : vector<8x128xf32>
    %2 = tpu.matmul %0, %1, %cst {dimension_numbers = #tpu.dot_dimension_numbers<[1], [0], [0], [1], [0, 0, 1, 1], [], []>} : vector<8x128xf32>, vector<128x128xf32>, vector<8x128xf32> -> vector<8x128xf32>
    %c0_3 = arith.constant 0 : index
    %c0_4 = arith.constant 0 : index
    %3 = vector.load %arg3[%c0_3, %c0_4] : memref<1x128xf32, #tpu.memory_space<vmem>>, vector<1x128xf32>
    %4 = vector.broadcast %3 : vector<1x128xf32> to vector<8x128xf32>
    %5 = arith.addf %2, %4 : vector<8x128xf32>
    %c0_5 = arith.constant 0 : index
    %c0_6 = arith.constant 0 : index
    %6 = vector.load %arg2[%c0_5, %c0_6] : memref<128x128xf32, #tpu.memory_space<vmem>>, vector<128x128xf32>
    %cst_7 = arith.constant 0.000000e+00 : f32
    %7 = vector.broadcast %cst_7 : f32 to vector<1x128xf32>
    %8 = vector.extract_strided_slice %5 {offsets = [0, 0], sizes = [1, 128], strides = [1, 1]} : vector<8x128xf32> to vector<1x128xf32>
    %cst_8 = arith.constant dense<0.000000e+00> : vector<1x128xf32>
    %9 = tpu.matmul %7, %6, %cst_8 {dimension_numbers = #tpu.dot_dimension_numbers<[1], [0], [0], [1], [0, 0, 1, 1], [], []>} : vector<1x128xf32>, vector<128x128xf32>, vector<1x128xf32> -> vector<1x128xf32>
    %10 = arith.addf %8, %9 : vector<1x128xf32>
    %11 = math.tanh %10 : vector<1x128xf32>
    %12 = vector.extract_strided_slice %5 {offsets = [1, 0], sizes = [1, 128], strides = [1, 1]} : vector<8x128xf32> to vector<1x128xf32>
    %cst_9 = arith.constant dense<0.000000e+00> : vector<1x128xf32>
    %13 = tpu.matmul %11, %6, %cst_9 {dimension_numbers = #tpu.dot_dimension_numbers<[1], [0], [0], [1], [0, 0, 1, 1], [], []>} : vector<1x128xf32>, vector<128x128xf32>, vector<1x128xf32> -> vector<1x128xf32>
    %14 = arith.addf %12, %13 : vector<1x128xf32>
    %15 = math.tanh %14 : vector<1x128xf32>
    %16 = vector.extract_strided_slice %5 {offsets = [2, 0], sizes = [1, 128], strides = [1, 1]} : vector<8x128xf32> to vector<1x128xf32>
    %cst_10 = arith.constant dense<0.000000e+00> : vector<1x128xf32>
    %17 = tpu.matmul %15, %6, %cst_10 {dimension_numbers = #tpu.dot_dimension_numbers<[1], [0], [0], [1], [0, 0, 1, 1], [], []>} : vector<1x128xf32>, vector<128x128xf32>, vector<1x128xf32> -> vector<1x128xf32>
    %18 = arith.addf %16, %17 : vector<1x128xf32>
    %19 = math.tanh %18 : vector<1x128xf32>
    %20 = vector.extract_strided_slice %5 {offsets = [3, 0], sizes = [1, 128], strides = [1, 1]} : vector<8x128xf32> to vector<1x128xf32>
    %cst_11 = arith.constant dense<0.000000e+00> : vector<1x128xf32>
    %21 = tpu.matmul %19, %6, %cst_11 {dimension_numbers = #tpu.dot_dimension_numbers<[1], [0], [0], [1], [0, 0, 1, 1], [], []>} : vector<1x128xf32>, vector<128x128xf32>, vector<1x128xf32> -> vector<1x128xf32>
    %22 = arith.addf %20, %21 : vector<1x128xf32>
    %23 = math.tanh %22 : vector<1x128xf32>
    %24 = vector.extract_strided_slice %5 {offsets = [4, 0], sizes = [1, 128], strides = [1, 1]} : vector<8x128xf32> to vector<1x128xf32>
    %cst_12 = arith.constant dense<0.000000e+00> : vector<1x128xf32>
    %25 = tpu.matmul %23, %6, %cst_12 {dimension_numbers = #tpu.dot_dimension_numbers<[1], [0], [0], [1], [0, 0, 1, 1], [], []>} : vector<1x128xf32>, vector<128x128xf32>, vector<1x128xf32> -> vector<1x128xf32>
    %26 = arith.addf %24, %25 : vector<1x128xf32>
    %27 = math.tanh %26 : vector<1x128xf32>
    %28 = vector.extract_strided_slice %5 {offsets = [5, 0], sizes = [1, 128], strides = [1, 1]} : vector<8x128xf32> to vector<1x128xf32>
    %cst_13 = arith.constant dense<0.000000e+00> : vector<1x128xf32>
    %29 = tpu.matmul %27, %6, %cst_13 {dimension_numbers = #tpu.dot_dimension_numbers<[1], [0], [0], [1], [0, 0, 1, 1], [], []>} : vector<1x128xf32>, vector<128x128xf32>, vector<1x128xf32> -> vector<1x128xf32>
    %30 = arith.addf %28, %29 : vector<1x128xf32>
    %31 = math.tanh %30 : vector<1x128xf32>
    %32 = vector.extract_strided_slice %5 {offsets = [6, 0], sizes = [1, 128], strides = [1, 1]} : vector<8x128xf32> to vector<1x128xf32>
    %cst_14 = arith.constant dense<0.000000e+00> : vector<1x128xf32>
    %33 = tpu.matmul %31, %6, %cst_14 {dimension_numbers = #tpu.dot_dimension_numbers<[1], [0], [0], [1], [0, 0, 1, 1], [], []>} : vector<1x128xf32>, vector<128x128xf32>, vector<1x128xf32> -> vector<1x128xf32>
    %34 = arith.addf %32, %33 : vector<1x128xf32>
    %35 = math.tanh %34 : vector<1x128xf32>
    %36 = vector.extract_strided_slice %5 {offsets = [7, 0], sizes = [1, 128], strides = [1, 1]} : vector<8x128xf32> to vector<1x128xf32>
    %cst_15 = arith.constant dense<0.000000e+00> : vector<1x128xf32>
    %37 = tpu.matmul %35, %6, %cst_15 {dimension_numbers = #tpu.dot_dimension_numbers<[1], [0], [0], [1], [0, 0, 1, 1], [], []>} : vector<1x128xf32>, vector<128x128xf32>, vector<1x128xf32> -> vector<1x128xf32>
    %38 = arith.addf %36, %37 : vector<1x128xf32>
    %39 = math.tanh %38 : vector<1x128xf32>
    %40 = tpu.concatenate %11, %15, %19, %23, %27, %31, %35, %39 in 0 : vector<1x128xf32>, vector<1x128xf32>, vector<1x128xf32>, vector<1x128xf32>, vector<1x128xf32>, vector<1x128xf32>, vector<1x128xf32>, vector<1x128xf32> -> vector<8x128xf32>
    %c0_16 = arith.constant 0 : index
    %c0_17 = arith.constant 0 : index
    %41 = vector.load %arg4[%c0_16, %c0_17] : memref<128x128xf32, #tpu.memory_space<vmem>>, vector<128x128xf32>
    %cst_18 = arith.constant dense<0.000000e+00> : vector<8x128xf32>
    %42 = tpu.matmul %40, %41, %cst_18 {dimension_numbers = #tpu.dot_dimension_numbers<[1], [0], [0], [1], [0, 0, 1, 1], [], []>} : vector<8x128xf32>, vector<128x128xf32>, vector<8x128xf32> -> vector<8x128xf32>
    %c0_19 = arith.constant 0 : index
    %c0_20 = arith.constant 0 : index
    %43 = vector.load %arg5[%c0_19, %c0_20] : memref<1x128xf32, #tpu.memory_space<vmem>>, vector<1x128xf32>
    %44 = vector.broadcast %43 : vector<1x128xf32> to vector<8x128xf32>
    %45 = arith.addf %42, %44 : vector<8x128xf32>
    %cst_21 = arith.constant dense<0xFF800000> : vector<8xf32>
    %46 = vector.multi_reduction <maximumf>, %45, %cst_21 [1] : vector<8x128xf32> to vector<8xf32>
    %47 = vector.shape_cast %46 : vector<8xf32> to vector<8x1xf32>
    %48 = vector.broadcast %47 : vector<8x1xf32> to vector<8x128xf32>
    %49 = arith.subf %45, %48 : vector<8x128xf32>
    %50 = math.exp %49 : vector<8x128xf32>
    %cst_22 = arith.constant dense<0.000000e+00> : vector<8xf32>
    %51 = vector.multi_reduction <add>, %50, %cst_22 [1] : vector<8x128xf32> to vector<8xf32>
    %52 = vector.shape_cast %51 : vector<8xf32> to vector<8x1xf32>
    %53 = math.log %52 : vector<8x1xf32>
    %54 = vector.broadcast %53 : vector<8x1xf32> to vector<8x128xf32>
    %55 = arith.subf %49, %54 : vector<8x128xf32>
    %c0_23 = arith.constant 0 : index
    %c0_24 = arith.constant 0 : index
    %56 = vector.load %arg6[%c0_23, %c0_24] : memref<8x128xf32, #tpu.memory_space<vmem>>, vector<8x128xf32>
    tpu.vector_store %arg6[%c0_23, %c0_24], %55 {strides = array<i32>} : memref<8x128xf32, #tpu.memory_space<vmem>>, vector<8x128xf32>,
    return
  }
}

</mosaic_0001>

<llo_original>
// kernel: tpu_custom_call.1
$region0: #{tpu_custom_call.1}
  #allocation0 [shape = 'u32[]', space=smem, size = 0x4, offset = 0x4, fixed_abs, tag = 'smem constant byte address 0x4 - core index']
  #allocation1 [shape = 'u32[72,128]{1,0:T(1,128)}', space=vmem, size = 0x9000, scoped, tag = 'internal scratch']
  %s0 = inlined_call_operand.hbm [shape: f32[8,128], index: 0, kind: input, shape index: {}]
  %s1 = inlined_call_operand.hbm [shape: f32[128,128], index: 1, kind: input, shape index: {}]
  %s2 = inlined_call_operand.hbm [shape: f32[128,128], index: 2, kind: input, shape index: {}]
  %s3 = inlined_call_operand.vmem [shape: f32[1,128], index: 3, kind: input, shape index: {}]
  %s4 = inlined_call_operand.hbm [shape: f32[128,128], index: 4, kind: input, shape index: {}]
  %s5 = inlined_call_operand.vmem [shape: f32[1,128], index: 5, kind: input, shape index: {}]
  %s6 = inlined_call_operand.hbm [shape: f32[8,128], index: 6, kind: output, shape index: {}]
  %s7 = sld [smem:[#allocation0]]
  $region50: #{tpu_custom_call.1} parent=0
    _
  %s9 = ssub.s32 1, %s7
  %s10 = scalar_select 0, %s9, %s7
  $region1: #{tpu_custom_call.1} parent=0
    #allocation2 [shape = 'u8[4096]{0}', space=vmem, size = 0x1000, scoped, tag = 'input window, operand 0, single buffered']
    #allocation3 [shape = 's32[1]{0}', space=sflag, size = 0x4, scoped, tag = 'scoped memory for tpu_custom_call.1']
    #allocation4 [shape = 's32[1]{0}', space=sflag, size = 0x4, scoped, tag = 'scoped memory for tpu_custom_call.1']
    #allocation5 [shape = 'u8[65536]{0}', space=vmem, size = 0x10000, scoped, tag = 'input window, operand 1, single buffered']
    #allocation6 [shape = 's32[1]{0}', space=sflag, size = 0x4, scoped, tag = 'scoped memory for tpu_custom_call.1']
    #allocation7 [shape = 'u8[65536]{0}', space=vmem, size = 0x10000, scoped, tag = 'input window, operand 2, single buffered']
    #allocation8 [shape = 'u8[65536]{0}', space=vmem, size = 0x10000, scoped, tag = 'input window, operand 4, single buffered']
    #allocation9 [shape = 's32[1]{0}', space=sflag, size = 0x4, scoped, tag = 'scoped memory for tpu_custom_call.1']
    #allocation10 [shape = 'u8[4096]{0}', space=vmem, size = 0x1000, scoped, tag = 'output window, operand 0, single buffered']
    %11 = vsyncpa [#allocation3], 0
    %12 = vsyncpa [#allocation6], 0
    %13 = vsyncpa [#allocation9], 0
    %14 = vsyncpa [#allocation4], 0
    // Predicated region
    $region2: #{tpu_custom_call.1} parent=1 // pred_check
      _
    $region3: #{tpu_custom_call.1} parent=1 // pred_check_branch
      %16 = sbr.rel (0) target = $region5
    $region4: #{tpu_custom_call.1} parent=1 // pred_region
      %18 = vsyncadd [#allocation3], 0
      %s20 = sshll.u32 %s0, 4
      %s21 = int_to_ptr.hbm [resolvable:$true] %s20
      %s22 = sshll.u32 [#allocation2], 4
      %s23 = int_to_ptr.vmem [resolvable:$true] %s22
      %25 = dma.hbm_to_vmem [thread:$0]  %s21, 128, %s23, [#allocation3]
    $region5: #{tpu_custom_call.1} parent=1 // pred_fallthru
      _
    // Predicated region
    $region6: #{tpu_custom_call.1} parent=1 // pred_check
      _
    $region7: #{tpu_custom_call.1} parent=1 // pred_check_branch
      %27 = sbr.rel (0) target = $region9
    $region8: #{tpu_custom_call.1} parent=1 // pred_region
      %29 = vsyncadd [#allocation6], 0
      %s30 = sshll.u32 %s1, 4
      %s31 = int_to_ptr.hbm [resolvable:$true] %s30
      %s32 = sshll.u32 [#allocation5], 4
      %s33 = int_to_ptr.vmem [resolvable:$true] %s32
      %38 = dma.hbm_to_vmem [thread:$0]  %s31, 2048, %s33, [#allocation6], 128, 128, 8
    $region9: #{tpu_custom_call.1} parent=1 // pred_fallthru
      _
    // Predicated region
    $region10: #{tpu_custom_call.1} parent=1 // pred_check
      _
    $region11: #{tpu_custom_call.1} parent=1 // pred_check_branch
      %40 = sbr.rel (0) target = $region13
    $region12: #{tpu_custom_call.1} parent=1 // pred_region
      %42 = vsyncadd [#allocation6], 0
      %s43 = sshll.u32 %s2, 4
      %s44 = int_to_ptr.hbm [resolvable:$true] %s43
      %s45 = sshll.u32 [#allocation7], 4
      %s46 = int_to_ptr.vmem [resolvable:$true] %s45
      %51 = dma.hbm_to_vmem [thread:$0]  %s44, 2048, %s46, [#allocation6], 128, 128, 8
    $region13: #{tpu_custom_call.1} parent=1 // pred_fallthru
      _
    // Predicated region
    $region14: #{tpu_custom_call.1} parent=1 // pred_check
      _
    $region15: #{tpu_custom_call.1} parent=1 // pred_check_branch
      %53 = sbr.rel (0) target = $region17
    $region16: #{tpu_custom_call.1} parent=1 // pred_region
      _
    $region17: #{tpu_custom_call.1} parent=1 // pred_fallthru
      _
    // Predicated region
    $region18: #{tpu_custom_call.1} parent=1 // pred_check
      _
    $region19: #{tpu_custom_call.1} parent=1 // pred_check_branch
      %55 = sbr.rel (0) target = $region21
    $region20: #{tpu_custom_call.1} parent=1 // pred_region
      %57 = vsyncadd [#allocation9], 0
      %s58 = sshll.u32 %s4, 4
      %s59 = int_to_ptr.hbm [resolvable:$true] %s58
      %s60 = sshll.u32 [#allocation8], 4
      %s61 = int_to_ptr.vmem [resolvable:$true] %s60
      %66 = dma.hbm_to_vmem [thread:$0]  %s59, 2048, %s61, [#allocation9], 128, 128, 8
    $region21: #{tpu_custom_call.1} parent=1 // pred_fallthru
      _
    // Predicated region
    $region22: #{tpu_custom_call.1} parent=1 // pred_check
      _
    $region23: #{tpu_custom_call.1} parent=1 // pred_check_branch
      %68 = sbr.rel (0) target = $region25
    $region24: #{tpu_custom_call.1} parent=1 // pred_region
      _
    $region25: #{tpu_custom_call.1} parent=1 // pred_fallthru
      _
    // Predicated region
    $region26: #{tpu_custom_call.1} parent=1 // pred_check
      _
    $region27: #{tpu_custom_call.1} parent=1 // pred_check_branch
      %70 = sbr.rel (0) target = $region29
    $region28: #{tpu_custom_call.1} parent=1 // pred_region
      %72 = dma.done [#allocation3], 128
    $region29: #{tpu_custom_call.1} parent=1 // pred_fallthru
      _
    // Predicated region
    $region30: #{tpu_custom_call.1} parent=1 // pred_check
      _
    $region31: #{tpu_custom_call.1} parent=1 // pred_check_branch
      %74 = sbr.rel (0) target = $region33
    $region32: #{tpu_custom_call.1} parent=1 // pred_region
      %76 = dma.done [#allocation6], 2048
    $region33: #{tpu_custom_call.1} parent=1 // pred_fallthru
      _
    // Predicated region
    $region34: #{tpu_custom_call.1} parent=1 // pred_check
      _
    $region35: #{tpu_custom_call.1} parent=1 // pred_check_branch
      %78 = sbr.rel (0) target = $region37
    $region36: #{tpu_custom_call.1} parent=1 // pred_region
      %80 = dma.done [#allocation6], 2048
    $region37: #{tpu_custom_call.1} parent=1 // pred_fallthru
      _
    // Predicated region
    $region38: #{tpu_custom_call.1} parent=1 // pred_check
      _
    $region39: #{tpu_custom_call.1} parent=1 // pred_check_branch
      %82 = sbr.rel (0) target = $region41
    $region40: #{tpu_custom_call.1} parent=1 // pred_region
      %84 = dma.done [#allocation9], 2048
    $region41: #{tpu_custom_call.1} parent=1 // pred_fallthru
      _
    %v85 = vld [vmem:[#allocation2] sm:$0xff]
    %v86 = vld [vmem:[#allocation5] sm:$0xff]
    %v87 = vld [vmem:[#allocation5 + $0x8] sm:$0xff]
    %v88 = vld [vmem:[#allocation5 + $0x10] sm:$0xff]
    %v89 = vld [vmem:[#allocation5 + $0x18] sm:$0xff]
    %v90 = vld [vmem:[#allocation5 + $0x20] sm:$0xff]
    %v91 = vld [vmem:[#allocation5 + $0x28] sm:$0xff]
    %v92 = vld [vmem:[#allocation5 + $0x30] sm:$0xff]
    %v93 = vld [vmem:[#allocation5 + $0x38] sm:$0xff]
    %v94 = vld [vmem:[#allocation5 + $0x40] sm:$0xff]
    %v95 = vld [vmem:[#allocation5 + $0x48] sm:$0xff]
    %v96 = vld [vmem:[#allocation5 + $0x50] sm:$0xff]
    %v97 = vld [vmem:[#allocation5 + $0x58] sm:$0xff]
    %v98 = vld [vmem:[#allocation5 + $0x60] sm:$0xff]
    %v99 = vld [vmem:[#allocation5 + $0x68] sm:$0xff]
    %v100 = vld [vmem:[#allocation5 + $0x70] sm:$0xff]
    %v101 = vld [vmem:[#allocation5 + $0x78] sm:$0xff]
    %v102 = vld [vmem:[%s3] sm:$0x1]
    %v104 = vperm.slane %v102, 0
    %106 = vmatpush.msra.mxu0 %v101
    %107 = vmatpush.msra.mxu0 %v100
    %108 = vmatpush.msra.mxu0 %v99
    %109 = vmatpush.msra.mxu0 %v98
    %110 = vmatpush.msra.mxu0 %v97
    %111 = vmatpush.msra.mxu0 %v96
    %112 = vmatpush.msra.mxu0 %v95
    %113 = vmatpush.msra.mxu0 %v94
    %114 = vmatpush.msra.mxu0 %v93
    %115 = vmatpush.msra.mxu0 %v92
    %116 = vmatpush.msra.mxu0 %v91
    %117 = vmatpush.msra.mxu0 %v90
    %118 = vmatpush.msra.mxu0 %v89
    %119 = vmatpush.msra.mxu0 %v88
    %120 = vmatpush.msra.mxu0 %v87
    %121 = vmatpush.msra.mxu0 %v86
    %122 = vmatmul.f32.gmra.mxu0 %v85
    %v123 = vpop.f32.mrf.mxu0
    %v124 = vadd.f32 %v104, %v123
    %125 = vdwg.mxu0
    %v126 = vld [vmem:[#allocation7] sm:$0xff]
    %v127 = vld [vmem:[#allocation7 + $0x8] sm:$0xff]
    %v128 = vld [vmem:[#allocation7 + $0x10] sm:$0xff]
    %v129 = vld [vmem:[#allocation7 + $0x18] sm:$0xff]
    %v130 = vld [vmem:[#allocation7 + $0x20] sm:$0xff]
    %v131 = vld [vmem:[#allocation7 + $0x28] sm:$0xff]
    %v132 = vld [vmem:[#allocation7 + $0x30] sm:$0xff]
    %v133 = vld [vmem:[#allocation7 + $0x38] sm:$0xff]
    %v134 = vld [vmem:[#allocation7 + $0x40] sm:$0xff]
    %v135 = vld [vmem:[#allocation7 + $0x48] sm:$0xff]
    %v136 = vld [vmem:[#allocation7 + $0x50] sm:$0xff]
    %v137 = vld [vmem:[#allocation7 + $0x58] sm:$0xff]
    %v138 = vld [vmem:[#allocation7 + $0x60] sm:$0xff]
    %v139 = vld [vmem:[#allocation7 + $0x68] sm:$0xff]
    %v140 = vld [vmem:[#allocation7 + $0x70] sm:$0xff]
    %v141 = vld [vmem:[#allocation7 + $0x78] sm:$0xff]
    %142 = vmatpush.msra.mxu0 %v141
    %143 = vmatpush.msra.mxu0 %v140
    %144 = vmatpush.msra.mxu0 %v139
    %145 = vmatpush.msra.mxu0 %v138
    %146 = vmatpush.msra.mxu0 %v137
    %147 = vmatpush.msra.mxu0 %v136
    %148 = vmatpush.msra.mxu0 %v135
    %149 = vmatpush.msra.mxu0 %v134
    %150 = vmatpush.msra.mxu0 %v133
    %151 = vmatpush.msra.mxu0 %v132
    %152 = vmatpush.msra.mxu0 %v131
    %153 = vmatpush.msra.mxu0 %v130
    %154 = vmatpush.msra.mxu0 %v129
    %155 = vmatpush.msra.mxu0 %v128
    %156 = vmatpush.msra.mxu0 %v127
    %157 = vmatpush.msra.mxu0 %v126
    %158 = vmatmul.f32.gmra.mxu0 0.0
    %v159 = vpop.f32.mrf.mxu0
    %v160 = vadd.f32 0.0, %v159
    %161 = vdwg.mxu0
    %v162 = vadd.f32 %v124, %v160
    %v163 = vtanh.pop %v162
    %164 = vmatpush.msra.mxu0 %v141
    %165 = vmatpush.msra.mxu0 %v140
    %166 = vmatpush.msra.mxu0 %v139
    %167 = vmatpush.msra.mxu0 %v138
    %168 = vmatpush.msra.mxu0 %v137
    %169 = vmatpush.msra.mxu0 %v136
    %170 = vmatpush.msra.mxu0 %v135
    %171 = vmatpush.msra.mxu0 %v134
    %172 = vmatpush.msra.mxu0 %v133
    %173 = vmatpush.msra.mxu0 %v132
    %174 = vmatpush.msra.mxu0 %v131
    %175 = vmatpush.msra.mxu0 %v130
    %176 = vmatpush.msra.mxu0 %v129
    %177 = vmatpush.msra.mxu0 %v128
    %178 = vmatpush.msra.mxu0 %v127
    %179 = vmatpush.msra.mxu0 %v126
    %180 = vmatmul.f32.gmra.mxu0 %v163
    %v181 = vpop.f32.mrf.mxu0
    %v182 = vadd.f32 0.0, %v181
    %183 = vdwg.mxu0
    %v185 = vrot.slane %v182, 7
    %v187 = vadd.f32 %v124, %v185
    %v188 = vtanh.pop %v187
    %v190 = vrot.slane %v188, 1
    %192 = vmatpush.msra.mxu0 %v141
    %193 = vmatpush.msra.mxu0 %v140
    %194 = vmatpush.msra.mxu0 %v139
    %195 = vmatpush.msra.mxu0 %v138
    %196 = vmatpush.msra.mxu0 %v137
    %197 = vmatpush.msra.mxu0 %v136
    %198 = vmatpush.msra.mxu0 %v135
    %199 = vmatpush.msra.mxu0 %v134
    %200 = vmatpush.msra.mxu0 %v133
    %201 = vmatpush.msra.mxu0 %v132
    %202 = vmatpush.msra.mxu0 %v131
    %203 = vmatpush.msra.mxu0 %v130
    %204 = vmatpush.msra.mxu0 %v129
    %205 = vmatpush.msra.mxu0 %v128
    %206 = vmatpush.msra.mxu0 %v127
    %207 = vmatpush.msra.mxu0 %v126
    %208 = vmatmul.f32.gmra.mxu0 %v190
    %v209 = vpop.f32.mrf.mxu0
    %v210 = vadd.f32 0.0, %v209
    %211 = vdwg.mxu0
    %v213 = vrot.slane %v210, 6
    %v215 = vadd.f32 %v124, %v213
    %v216 = vtanh.pop %v215
    %v218 = vrot.slane %v216, 2
    %220 = vmatpush.msra.mxu0 %v141
    %221 = vmatpush.msra.mxu0 %v140
    %222 = vmatpush.msra.mxu0 %v139
    %223 = vmatpush.msra.mxu0 %v138
    %224 = vmatpush.msra.mxu0 %v137
    %225 = vmatpush.msra.mxu0 %v136
    %226 = vmatpush.msra.mxu0 %v135
    %227 = vmatpush.msra.mxu0 %v134
    %228 = vmatpush.msra.mxu0 %v133
    %229 = vmatpush.msra.mxu0 %v132
    %230 = vmatpush.msra.mxu0 %v131
    %231 = vmatpush.msra.mxu0 %v130
    %232 = vmatpush.msra.mxu0 %v129
    %233 = vmatpush.msra.mxu0 %v128
    %234 = vmatpush.msra.mxu0 %v127
    %235 = vmatpush.msra.mxu0 %v126
    %236 = vmatmul.f32.gmra.mxu0 %v218
    %v237 = vpop.f32.mrf.mxu0
    %v238 = vadd.f32 0.0, %v237
    %239 = vdwg.mxu0
    %v241 = vrot.slane %v238, 5
    %v243 = vadd.f32 %v124, %v241
    %v244 = vtanh.pop %v243
    %v246 = vrot.slane %v244, 3
    %248 = vmatpush.msra.mxu0 %v141
    %249 = vmatpush.msra.mxu0 %v140
    %250 = vmatpush.msra.mxu0 %v139
    %251 = vmatpush.msra.mxu0 %v138
    %252 = vmatpush.msra.mxu0 %v137
    %253 = vmatpush.msra.mxu0 %v136
    %254 = vmatpush.msra.mxu0 %v135
    %255 = vmatpush.msra.mxu0 %v134
    %256 = vmatpush.msra.mxu0 %v133
    %257 = vmatpush.msra.mxu0 %v132
    %258 = vmatpush.msra.mxu0 %v131
    %259 = vmatpush.msra.mxu0 %v130
    %260 = vmatpush.msra.mxu0 %v129
    %261 = vmatpush.msra.mxu0 %v128
    %262 = vmatpush.msra.mxu0 %v127
    %263 = vmatpush.msra.mxu0 %v126
    %264 = vmatmul.f32.gmra.mxu0 %v246
    %v265 = vpop.f32.mrf.mxu0
    %v266 = vadd.f32 0.0, %v265
    %267 = vdwg.mxu0
    %v269 = vrot.slane %v266, 4
    %v271 = vadd.f32 %v124, %v269
    %v272 = vtanh.pop %v271
    %v274 = vrot.slane %v272, 4
    %276 = vmatpush.msra.mxu0 %v141
    %277 = vmatpush.msra.mxu0 %v140
    %278 = vmatpush.msra.mxu0 %v139
    %279 = vmatpush.msra.mxu0 %v138
    %280 = vmatpush.msra.mxu0 %v137
    %281 = vmatpush.msra.mxu0 %v136
    %282 = vmatpush.msra.mxu0 %v135
    %283 = vmatpush.msra.mxu0 %v134
    %284 = vmatpush.msra.mxu0 %v133
    %285 = vmatpush.msra.mxu0 %v132
    %286 = vmatpush.msra.mxu0 %v131
    %287 = vmatpush.msra.mxu0 %v130
    %288 = vmatpush.msra.mxu0 %v129
    %289 = vmatpush.msra.mxu0 %v128
    %290 = vmatpush.msra.mxu0 %v127
    %291 = vmatpush.msra.mxu0 %v126
    %292 = vmatmul.f32.gmra.mxu0 %v274
    %v293 = vpop.f32.mrf.mxu0
    %v294 = vadd.f32 0.0, %v293
    %295 = vdwg.mxu0
    %v297 = vrot.slane %v294, 3
    %v299 = vadd.f32 %v124, %v297
    %v300 = vtanh.pop %v299
    %v302 = vrot.slane %v300, 5
    %304 = vmatpush.msra.mxu0 %v141
    %305 = vmatpush.msra.mxu0 %v140
    %306 = vmatpush.msra.mxu0 %v139
    %307 = vmatpush.msra.mxu0 %v138
    %308 = vmatpush.msra.mxu0 %v137
    %309 = vmatpush.msra.mxu0 %v136
    %310 = vmatpush.msra.mxu0 %v135
    %311 = vmatpush.msra.mxu0 %v134
    %312 = vmatpush.msra.mxu0 %v133
    %313 = vmatpush.msra.mxu0 %v132
    %314 = vmatpush.msra.mxu0 %v131
    %315 = vmatpush.msra.mxu0 %v130
    %316 = vmatpush.msra.mxu0 %v129
    %317 = vmatpush.msra.mxu0 %v128
    %318 = vmatpush.msra.mxu0 %v127
    %319 = vmatpush.msra.mxu0 %v126
    %320 = vmatmul.f32.gmra.mxu0 %v302
    %v321 = vpop.f32.mrf.mxu0
    %v322 = vadd.f32 0.0, %v321
    %323 = vdwg.mxu0
    %v325 = vrot.slane %v322, 2
    %v327 = vadd.f32 %v124, %v325
    %v328 = vtanh.pop %v327
    %v330 = vrot.slane %v328, 6
    %332 = vmatpush.msra.mxu0 %v141
    %333 = vmatpush.msra.mxu0 %v140
    %334 = vmatpush.msra.mxu0 %v139
    %335 = vmatpush.msra.mxu0 %v138
    %336 = vmatpush.msra.mxu0 %v137
    %337 = vmatpush.msra.mxu0 %v136
    %338 = vmatpush.msra.mxu0 %v135
    %339 = vmatpush.msra.mxu0 %v134
    %340 = vmatpush.msra.mxu0 %v133
    %341 = vmatpush.msra.mxu0 %v132
    %342 = vmatpush.msra.mxu0 %v131
    %343 = vmatpush.msra.mxu0 %v130
    %344 = vmatpush.msra.mxu0 %v129
    %345 = vmatpush.msra.mxu0 %v128
    %346 = vmatpush.msra.mxu0 %v127
    %347 = vmatpush.msra.mxu0 %v126
    %348 = vmatmul.f32.gmra.mxu0 %v330
    %v349 = vpop.f32.mrf.mxu0
    %v350 = vadd.f32 0.0, %v349
    %351 = vdwg.mxu0
    %v353 = vrot.slane %v350, 1
    %v355 = vadd.f32 %v124, %v353
    %v356 = vtanh.pop %v355
    %vm357 = vcmask 1040384
    %v358 = vsel %vm357, %v163, %v188
    %vm359 = vcmask 1041408
    %v360 = vsel %vm359, %v358, %v216
    %vm361 = vcmask 1042432
    %v362 = vsel %vm361, %v360, %v244
    %vm363 = vcmask 1043456
    %v364 = vsel %vm363, %v362, %v272
    %vm365 = vcmask 1044480
    %v366 = vsel %vm365, %v364, %v300
    %vm367 = vcmask 1045504
    %v368 = vsel %vm367, %v366, %v328
    %vm369 = vcmask 1046528
    %v370 = vsel %vm369, %v368, %v356
    %v371 = vld [vmem:[#allocation8] sm:$0xff]
    %v372 = vld [vmem:[#allocation8 + $0x8] sm:$0xff]
    %v373 = vld [vmem:[#allocation8 + $0x10] sm:$0xff]
    %v374 = vld [vmem:[#allocation8 + $0x18] sm:$0xff]
    %v375 = vld [vmem:[#allocation8 + $0x20] sm:$0xff]
    %v376 = vld [vmem:[#allocation8 + $0x28] sm:$0xff]
    %v377 = vld [vmem:[#allocation8 + $0x30] sm:$0xff]
    %v378 = vld [vmem:[#allocation8 + $0x38] sm:$0xff]
    %v379 = vld [vmem:[#allocation8 + $0x40] sm:$0xff]
    %v380 = vld [vmem:[#allocation8 + $0x48] sm:$0xff]
    %v381 = vld [vmem:[#allocation8 + $0x50] sm:$0xff]
    %v382 = vld [vmem:[#allocation8 + $0x58] sm:$0xff]
    %v383 = vld [vmem:[#allocation8 + $0x60] sm:$0xff]
    %v384 = vld [vmem:[#allocation8 + $0x68] sm:$0xff]
    %v385 = vld [vmem:[#allocation8 + $0x70] sm:$0xff]
    %v386 = vld [vmem:[#allocation8 + $0x78] sm:$0xff]
    %v387 = vld [vmem:[%s5] sm:$0x1]
    %v389 = vperm.slane %v387, 0
    %391 = vmatpush.msra.mxu0 %v386
    %392 = vmatpush.msra.mxu0 %v385
    %393 = vmatpush.msra.mxu0 %v384
    %394 = vmatpush.msra.mxu0 %v383
    %395 = vmatpush.msra.mxu0 %v382
    %396 = vmatpush.msra.mxu0 %v381
    %397 = vmatpush.msra.mxu0 %v380
    %398 = vmatpush.msra.mxu0 %v379
    %399 = vmatpush.msra.mxu0 %v378
    %400 = vmatpush.msra.mxu0 %v377
    %401 = vmatpush.msra.mxu0 %v376
    %402 = vmatpush.msra.mxu0 %v375
    %403 = vmatpush.msra.mxu0 %v374
    %404 = vmatpush.msra.mxu0 %v373
    %405 = vmatpush.msra.mxu0 %v372
    %406 = vmatpush.msra.mxu0 %v371
    %407 = vmatmul.f32.gmra.mxu0 %v370
    %v408 = vpop.f32.mrf.mxu0
    %v409 = vadd.f32 %v389, %v408
    %410 = vdwg.mxu0
    %411 = vmax.xlane.f32.xlu0 %v409
    %v412 = vpop.xlane.xlu0 %411
    %v413 = vsub.f32 %v409, %v412
    %v414 = vmul.f32 %v413, 1.442695
    %v415 = vpow.pop %v414
    %416 = vadd.xlane.f32.xlu0 %v415
    %v417 = vpop.xlane.xlu0 %416
    %v418 = vlog2.pop %v417
    %v419 = vmul.f32 %v418, 0.6931472
    %v420 = vsub.f32 %v413, %v419
    %421 = vst [vmem:[#allocation10] sm:$0xff] %v420
    // Predicated region
    $region42: #{tpu_custom_call.1} parent=1 // pred_check
      _
    $region43: #{tpu_custom_call.1} parent=1 // pred_check_branch
      %423 = sbr.rel (0) target = $region45
    $region44: #{tpu_custom_call.1} parent=1 // pred_region
      %425 = vsyncadd [#allocation4], 0
      %s427 = sshll.u32 [#allocation10], 4
      %s428 = int_to_ptr.vmem [resolvable:$true] %s427
      %s429 = sshll.u32 %s6, 4
      %s430 = int_to_ptr.hbm [resolvable:$true] %s429
      %432 = dma.vmem_to_hbm [thread:$0]  %s428, 128, %s430, [#allocation4]
    $region45: #{tpu_custom_call.1} parent=1 // pred_fallthru
      _
    // Predicated region
    $region46: #{tpu_custom_call.1} parent=1 // pred_check
      _
    $region47: #{tpu_custom_call.1} parent=1 // pred_check_branch
      %434 = sbr.rel (0) target = $region49
    $region48: #{tpu_custom_call.1} parent=1 // pred_region
      %436 = dma.done [#allocation4], 128
    $region49: #{tpu_custom_call.1} parent=1 // pred_fallthru
      _
    %437 = vsyncpa [#allocation3], 1
    %438 = vsyncpa [#allocation6], 1
    %439 = vsyncpa [#allocation9], 1
    %440 = vsyncpa [#allocation4], 1

</llo_original>
